<compile_context>
chip_gen: v7x
topology: tpu7x:2x2x1
jax: 0.10.0
libtpu: 0.0.40
codegen_flags: <defaults>
</compile_context>

<pallas_src>
import jax
import jax.numpy as jnp
import numpy as np
from jax.experimental import pallas as pl
from jax.experimental.pallas import tpu as pltpu

# ----------------------------- configuration -------------------------------
BATCH = 8
IN_DIM = 16
HIDDEN_DIM = 32
OUT_DIM = 8
NUM_LAYERS = 3
NEG_SLOPE = 0.01          # torch.nn.functional.leaky_relu default slope
BATCH_TILE = 8            # rows per grid step (sublane-aligned)

# Row offsets inside the packed parameter slab (lane width = HIDDEN_DIM).
OFF_W_IN = 0                                    # (IN_DIM, H)
OFF_HID = IN_DIM                                # NUM_LAYERS x (H, H)
OFF_W_OUT = OFF_HID + NUM_LAYERS * HIDDEN_DIM   # (H, H), cols >= OUT_DIM zero
OFF_BIAS = OFF_W_OUT + HIDDEN_DIM               # 8 rows: b_in, b_hid[0..L-1], b_out, pad
N_BIAS_ROWS = 8
P_ROWS = OFF_BIAS + N_BIAS_ROWS                 # 152


# ------------------------------ Pallas kernel ------------------------------
def _leaky_relu(z):
    # max(z, 0.01*z) == leaky_relu(z) for all finite z; pure VPU (vmul + vmax).
    return jnp.maximum(z, NEG_SLOPE * z)


def mlp_classifier_kernel(x_ref, p_ref, o_ref):
    f32 = jnp.float32
    x = x_ref[...]                                            # (TB, IN_DIM)

    # ---- input projection + leaky_relu ----
    w_in = p_ref[OFF_W_IN:OFF_W_IN + IN_DIM, :]               # (IN_DIM, H)
    b_in = p_ref[OFF_BIAS:OFF_BIAS + 1, :]                    # (1, H)
    h = _leaky_relu(jnp.dot(x, w_in, preferred_element_type=f32) + b_in)

    # ---- residual hidden blocks (static Python loop, L = 3) ----
    for i in range(NUM_LAYERS):
        r0 = OFF_HID + i * HIDDEN_DIM
        w_i = p_ref[r0:r0 + HIDDEN_DIM, :]                    # (H, H)
        b_i = p_ref[OFF_BIAS + 1 + i:OFF_BIAS + 2 + i, :]     # (1, H)
        h = _leaky_relu(jnp.dot(h, w_i, preferred_element_type=f32) + b_i) + h

    # ---- output projection (lane-padded to H; cols >= OUT_DIM stay zero) ----
    w_out = p_ref[OFF_W_OUT:OFF_W_OUT + HIDDEN_DIM, :]        # (H, H)
    b_out = p_ref[OFF_BIAS + 1 + NUM_LAYERS:OFF_BIAS + 2 + NUM_LAYERS, :]
    o_ref[...] = jnp.dot(h, w_out, preferred_element_type=f32) + b_out


# ------------------------------ host wrapper --------------------------------
def pack_params(params):
    """Pack every weight / bias into one (P_ROWS, HIDDEN_DIM) f32 slab."""
    w_in = params["w_in"]                                                 # (IN_DIM, H)
    hid_w = params["hid_w"].reshape(NUM_LAYERS * HIDDEN_DIM, HIDDEN_DIM)  # (L*H, H)
    w_out = jnp.pad(params["w_out"], ((0, 0), (0, HIDDEN_DIM - OUT_DIM))) # (H, H)
    bias = jnp.zeros((N_BIAS_ROWS, HIDDEN_DIM), jnp.float32)
    bias = bias.at[0].set(params["b_in"])
    bias = bias.at[1:1 + NUM_LAYERS].set(params["hid_b"])
    bias = bias.at[1 + NUM_LAYERS, :OUT_DIM].set(params["b_out"])
    return jnp.concatenate([w_in, hid_w, w_out, bias], axis=0)            # (152, 32)


def mlp_classifier_forward(x, params):
    B = x.shape[0]
    assert B % BATCH_TILE == 0, "batch must be a multiple of BATCH_TILE"
    p_slab = pack_params(params)

    out_pad = pl.pallas_call(
        mlp_classifier_kernel,
        out_shape=jax.ShapeDtypeStruct((B, HIDDEN_DIM), jnp.float32),
        grid=(B // BATCH_TILE,),
        in_specs=[
            pl.BlockSpec((BATCH_TILE, IN_DIM), lambda i: (i, 0)),   # x tile
            pl.BlockSpec((P_ROWS, HIDDEN_DIM), lambda i: (0, 0)),   # param slab (resident)
        ],
        out_specs=pl.BlockSpec((BATCH_TILE, HIDDEN_DIM), lambda i: (i, 0)),
        compiler_params=pltpu.CompilerParams(
            dimension_semantics=("parallel",)),   # shards batch across TCs on v7x
    )(x, p_slab)
    # Logits live in the first OUT_DIM lanes of the padded output slab.
    return out_pad[:, :OUT_DIM]


# --------------------------- pure-JAX reference -----------------------------
def reference_forward(x, params):
    hp = jax.lax.Precision.HIGHEST

    def lrelu(z):
        return jnp.where(z >= 0, z, NEG_SLOPE * z)

    h = lrelu(jnp.dot(x, params["w_in"], precision=hp) + params["b_in"])
    for i in range(NUM_LAYERS):
        h = lrelu(jnp.dot(h, params["hid_w"][i], precision=hp)
                  + params["hid_b"][i]) + h
    return jnp.dot(h, params["w_out"], precision=hp) + params["b_out"]


# ------------------------------- init / main --------------------------------
def init_params(key):
    ks = jax.random.split(key, 6)
    s_in = 1.0 / np.sqrt(IN_DIM)
    s_h = 1.0 / np.sqrt(HIDDEN_DIM)
    u = jax.random.uniform
    return {
        # (fan_in, fan_out) layout == transpose of torch nn.Linear.weight;
        # uniform(-1/sqrt(fan_in), 1/sqrt(fan_in)) like torch's default init.
        "w_in": u(ks[0], (IN_DIM, HIDDEN_DIM), jnp.float32, -s_in, s_in),
        "b_in": u(ks[1], (HIDDEN_DIM,), jnp.float32, -s_in, s_in),
        "hid_w": u(ks[2], (NUM_LAYERS, HIDDEN_DIM, HIDDEN_DIM), jnp.float32, -s_h, s_h),
        "hid_b": u(ks[3], (NUM_LAYERS, HIDDEN_DIM), jnp.float32, -s_h, s_h),
        "w_out": u(ks[4], (HIDDEN_DIM, OUT_DIM), jnp.float32, -s_h, s_h),
        "b_out": u(ks[5], (OUT_DIM,), jnp.float32, -s_h, s_h),
    }


if __name__ == "__main__":
    key = jax.random.PRNGKey(0)
    k_p, k_x = jax.random.split(key)

    params = init_params(k_p)
    x = jax.random.normal(k_x, (BATCH, IN_DIM), jnp.float32)

    logits = mlp_classifier_forward(x, params)
    logits = jax.block_until_ready(logits)

    ref = reference_forward(x, params)
    np.testing.assert_allclose(np.asarray(logits), np.asarray(ref),
                               rtol=1e-4, atol=1e-4)

    print("KERNEL_OK")
</pallas_src>

<mosaic_0001>
module attributes {stable_mosaic.version = 11 : i64} {
  func.func @mlp_classifier_kernel(%arg0: i32, %arg1: memref<8x16xf32, #tpu.memory_space<vmem>>, %arg2: memref<152x32xf32, #tpu.memory_space<vmem>>, %arg3: memref<8x32xf32, #tpu.memory_space<vmem>>) attributes {dimension_semantics = [#tpu.dimension_semantics<parallel>], iteration_bounds = array<i64: 1>, scalar_prefetch = 0 : i64, scratch_operands = 0 : i64, tpu.core_type = #tpu.core_type<tc>, window_params = [{transform_indices = @transform_0, window_bounds = array<i64: 8, 16>}, {pipeline_mode = #tpu.pipeline_mode<synchronous>, transform_indices = @transform_1, window_bounds = array<i64: 152, 32>}, {transform_indices = @transform_2, window_bounds = array<i64: 8, 32>}]} {
    %c0 = arith.constant 0 : index
    %c0_0 = arith.constant 0 : index
    %0 = vector.load %arg1[%c0, %c0_0] : memref<8x16xf32, #tpu.memory_space<vmem>>, vector<8x16xf32>
    %c0_1 = arith.constant 0 : index
    %c0_2 = arith.constant 0 : index
    %1 = vector.load %arg2[%c0_1, %c0_2] : memref<152x32xf32, #tpu.memory_space<vmem>>, vector<16x32xf32>
    %c144 = arith.constant 144 : index
    %c0_3 = arith.constant 0 : index
    %2 = vector.load %arg2[%c144, %c0_3] : memref<152x32xf32, #tpu.memory_space<vmem>>, vector<1x32xf32>
    %cst = arith.constant dense<0.000000e+00> : vector<8x32xf32>
    %3 = tpu.matmul %0, %1, %cst {dimension_numbers = #tpu.dot_dimension_numbers<[1], [0], [0], [1], [0, 0, 1, 1], [], []>} : vector<8x16xf32>, vector<16x32xf32>, vector<8x32xf32> -> vector<8x32xf32>
    %4 = vector.broadcast %2 : vector<1x32xf32> to vector<8x32xf32>
    %5 = arith.addf %3, %4 : vector<8x32xf32>
    %cst_4 = arith.constant 0.00999999977 : f32
    %6 = vector.broadcast %cst_4 : f32 to vector<8x32xf32>
    %7 = arith.mulf %6, %5 : vector<8x32xf32>
    %8 = arith.maximumf %5, %7 : vector<8x32xf32>
    %c16 = arith.constant 16 : index
    %c0_5 = arith.constant 0 : index
    %9 = vector.load %arg2[%c16, %c0_5] : memref<152x32xf32, #tpu.memory_space<vmem>>, vector<32x32xf32>
    %c145 = arith.constant 145 : index
    %c0_6 = arith.constant 0 : index
    %10 = vector.load %arg2[%c145, %c0_6] : memref<152x32xf32, #tpu.memory_space<vmem>>, vector<1x32xf32>
    %cst_7 = arith.constant dense<0.000000e+00> : vector<8x32xf32>
    %11 = tpu.matmul %8, %9, %cst_7 {dimension_numbers = #tpu.dot_dimension_numbers<[1], [0], [0], [1], [0, 0, 1, 1], [], []>} : vector<8x32xf32>, vector<32x32xf32>, vector<8x32xf32> -> vector<8x32xf32>
    %12 = vector.broadcast %10 : vector<1x32xf32> to vector<8x32xf32>
    %13 = arith.addf %11, %12 : vector<8x32xf32>
    %cst_8 = arith.constant 0.00999999977 : f32
    %14 = vector.broadcast %cst_8 : f32 to vector<8x32xf32>
    %15 = arith.mulf %14, %13 : vector<8x32xf32>
    %16 = arith.maximumf %13, %15 : vector<8x32xf32>
    %17 = arith.addf %16, %8 : vector<8x32xf32>
    %c48 = arith.constant 48 : index
    %c0_9 = arith.constant 0 : index
    %18 = vector.load %arg2[%c48, %c0_9] : memref<152x32xf32, #tpu.memory_space<vmem>>, vector<32x32xf32>
    %c146 = arith.constant 146 : index
    %c0_10 = arith.constant 0 : index
    %19 = vector.load %arg2[%c146, %c0_10] : memref<152x32xf32, #tpu.memory_space<vmem>>, vector<1x32xf32>
    %cst_11 = arith.constant dense<0.000000e+00> : vector<8x32xf32>
    %20 = tpu.matmul %17, %18, %cst_11 {dimension_numbers = #tpu.dot_dimension_numbers<[1], [0], [0], [1], [0, 0, 1, 1], [], []>} : vector<8x32xf32>, vector<32x32xf32>, vector<8x32xf32> -> vector<8x32xf32>
    %21 = vector.broadcast %19 : vector<1x32xf32> to vector<8x32xf32>
    %22 = arith.addf %20, %21 : vector<8x32xf32>
    %cst_12 = arith.constant 0.00999999977 : f32
    %23 = vector.broadcast %cst_12 : f32 to vector<8x32xf32>
    %24 = arith.mulf %23, %22 : vector<8x32xf32>
    %25 = arith.maximumf %22, %24 : vector<8x32xf32>
    %26 = arith.addf %25, %17 : vector<8x32xf32>
    %c80 = arith.constant 80 : index
    %c0_13 = arith.constant 0 : index
    %27 = vector.load %arg2[%c80, %c0_13] : memref<152x32xf32, #tpu.memory_space<vmem>>, vector<32x32xf32>
    %c147 = arith.constant 147 : index
    %c0_14 = arith.constant 0 : index
    %28 = vector.load %arg2[%c147, %c0_14] : memref<152x32xf32, #tpu.memory_space<vmem>>, vector<1x32xf32>
    %cst_15 = arith.constant dense<0.000000e+00> : vector<8x32xf32>
    %29 = tpu.matmul %26, %27, %cst_15 {dimension_numbers = #tpu.dot_dimension_numbers<[1], [0], [0], [1], [0, 0, 1, 1], [], []>} : vector<8x32xf32>, vector<32x32xf32>, vector<8x32xf32> -> vector<8x32xf32>
    %30 = vector.broadcast %28 : vector<1x32xf32> to vector<8x32xf32>
    %31 = arith.addf %29, %30 : vector<8x32xf32>
    %cst_16 = arith.constant 0.00999999977 : f32
    %32 = vector.broadcast %cst_16 : f32 to vector<8x32xf32>
    %33 = arith.mulf %32, %31 : vector<8x32xf32>
    %34 = arith.maximumf %31, %33 : vector<8x32xf32>
    %35 = arith.addf %34, %26 : vector<8x32xf32>
    %c112 = arith.constant 112 : index
    %c0_17 = arith.constant 0 : index
    %36 = vector.load %arg2[%c112, %c0_17] : memref<152x32xf32, #tpu.memory_space<vmem>>, vector<32x32xf32>
    %c148 = arith.constant 148 : index
    %c0_18 = arith.constant 0 : index
    %37 = vector.load %arg2[%c148, %c0_18] : memref<152x32xf32, #tpu.memory_space<vmem>>, vector<1x32xf32>
    %cst_19 = arith.constant dense<0.000000e+00> : vector<8x32xf32>
    %38 = tpu.matmul %35, %36, %cst_19 {dimension_numbers = #tpu.dot_dimension_numbers<[1], [0], [0], [1], [0, 0, 1, 1], [], []>} : vector<8x32xf32>, vector<32x32xf32>, vector<8x32xf32> -> vector<8x32xf32>
    %39 = vector.broadcast %37 : vector<1x32xf32> to vector<8x32xf32>
    %40 = arith.addf %38, %39 : vector<8x32xf32>
    %c0_20 = arith.constant 0 : index
    %c0_21 = arith.constant 0 : index
    %41 = vector.load %arg3[%c0_20, %c0_21] : memref<8x32xf32, #tpu.memory_space<vmem>>, vector<8x32xf32>
    tpu.vector_store %arg3[%c0_20, %c0_21], %40 {strides = array<i32>} : memref<8x32xf32, #tpu.memory_space<vmem>>, vector<8x32xf32>,
    return
  }
  func.func @transform_0(%arg0: i32) -> (i32, i32) {
    %c0_i32 = arith.constant 0 : i32
    %c0_i32_0 = arith.constant 0 : i32
    return %arg0, %c0_i32 : i32, i32
  }
  func.func @transform_1(%arg0: i32) -> (i32, i32) {
    %c0_i32 = arith.constant 0 : i32
    %c0_i32_0 = arith.constant 0 : i32
    %c0_i32_1 = arith.constant 0 : i32
    return %c0_i32, %c0_i32_0 : i32, i32
  }
  func.func @transform_2(%arg0: i32) -> (i32, i32) {
    %c0_i32 = arith.constant 0 : i32
    %c0_i32_0 = arith.constant 0 : i32
    return %arg0, %c0_i32 : i32, i32
  }
}

</mosaic_0001>

<llo_original>
// kernel: tpu_custom_call.1
$region0: #{tpu_custom_call.1}
  #allocation0 [shape = 'u32[]', space=smem, size = 0x4, offset = 0x4, fixed_abs, tag = 'smem constant byte address 0x4 - core index']
  #allocation1 [shape = 'u32[144,128]{1,0:T(1,128)}', space=vmem, size = 0x12000, scoped, tag = 'internal scratch']
  %s0 = inlined_call_operand.vmem [shape: f32[8,16], index: 0, kind: input, shape index: {}]
  %s1 = inlined_call_operand.vmem [shape: f32[152,32], index: 1, kind: input, shape index: {}]
  %s2 = inlined_call_operand.hbm [shape: f32[8,32], index: 2, kind: output, shape index: {}]
  %s3 = sld [smem:[#allocation0]]
  $region18: #{tpu_custom_call.1} parent=0
    _
  %s5 = ssub.s32 1, %s3
  %s6 = scalar_select 0, %s5, %s3
  $region1: #{tpu_custom_call.1} parent=0
    #allocation2 [shape = 'u8[4096]{0}', space=vmem, size = 0x1000, scoped, tag = 'output window, operand 0, single buffered']
    #allocation3 [shape = 's32[1]{0}', space=sflag, size = 0x4, scoped, tag = 'scoped memory for tpu_custom_call.1']
    %7 = vsyncpa [#allocation3], 0
    // Predicated region
    $region2: #{tpu_custom_call.1} parent=1 // pred_check
      _
    $region3: #{tpu_custom_call.1} parent=1 // pred_check_branch
      %9 = sbr.rel (0) target = $region5
    $region4: #{tpu_custom_call.1} parent=1 // pred_region
      _
    $region5: #{tpu_custom_call.1} parent=1 // pred_fallthru
      _
    // Predicated region
    $region6: #{tpu_custom_call.1} parent=1 // pred_check
      _
    $region7: #{tpu_custom_call.1} parent=1 // pred_check_branch
      %11 = sbr.rel (0) target = $region9
    $region8: #{tpu_custom_call.1} parent=1 // pred_region
      _
    $region9: #{tpu_custom_call.1} parent=1 // pred_fallthru
      _
    %v12 = vld [vmem:[%s0] sm:$0xff]
    %v13 = vld [vmem:[%s1] sm:$0xff]
    %v14 = vld [vmem:[%s1 + $0x8] sm:$0xff]
    %v15 = vld [vmem:[%s1 + $0x90] sm:$0x1]
    %v16 = vlaneseq
    %v17 = vshrl.u32 %v16, 7
    %v18 = vsub.s32 0, %v17
    %v19 = vrot.slane %v15, %v18
    %vm20 = vcmask 130048
    %v22 = vsel %vm20, %v12, 0
    %24 = vmatprep.subr.mxu0 0.0
    %25 = vmatpush1.msra.mxu0 %v13
    %26 = vmatprep.subr.mxu0 0.0
    %27 = vmatpush1.msra.mxu0 %v14
    %28 = vmatprep.subr.mxu0 0.0
    %29 = vmatpush1.msra.mxu0 0.0
    %30 = vmatprep.subr.mxu0 0.0
    %31 = vmatpush1.msra.mxu0 0.0
    %32 = vmatprep.subr.mxu0 0.0
    %33 = vmatpush1.msra.mxu0 0.0
    %34 = vmatprep.subr.mxu0 0.0
    %35 = vmatpush1.msra.mxu0 0.0
    %36 = vmatprep.subr.mxu0 0.0
    %37 = vmatpush1.msra.mxu0 0.0
    %38 = vmatprep.subr.mxu0 0.0
    %39 = vmatpush1.msra.mxu0 0.0
    %40 = vmatprep.subr.mxu0 0.0
    %41 = vmatpush1.msra.mxu0 0.0
    %42 = vmatprep.subr.mxu0 0.0
    %43 = vmatpush1.msra.mxu0 0.0
    %44 = vmatprep.subr.mxu0 0.0
    %45 = vmatpush1.msra.mxu0 0.0
    %46 = vmatprep.subr.mxu0 0.0
    %47 = vmatpush1.msra.mxu0 0.0
    %48 = vmatprep.subr.mxu0 0.0
    %49 = vmatpush1.msra.mxu0 0.0
    %50 = vmatprep.subr.mxu0 0.0
    %51 = vmatpush1.msra.mxu0 0.0
    %52 = vmatprep.subr.mxu0 0.0
    %53 = vmatpush1.msra.mxu0 0.0
    %54 = vmatprep.subr.mxu0 0.0
    %55 = vmatpush1.msra.mxu0 0.0
    %56 = vmatprep.subr.mxu0 0.0
    %57 = vmatpush1.msra.mxu0 0.0
    %58 = vmatprep.subr.mxu0 0.0
    %59 = vmatpush1.msra.mxu0 0.0
    %60 = vmatprep.subr.mxu0 0.0
    %61 = vmatpush1.msra.mxu0 0.0
    %62 = vmatprep.subr.mxu0 0.0
    %63 = vmatpush1.msra.mxu0 0.0
    %64 = vmatprep.subr.mxu0 0.0
    %65 = vmatpush1.msra.mxu0 0.0
    %66 = vmatprep.subr.mxu0 0.0
    %67 = vmatpush1.msra.mxu0 0.0
    %68 = vmatprep.subr.mxu0 0.0
    %69 = vmatpush1.msra.mxu0 0.0
    %70 = vmatprep.subr.mxu0 0.0
    %71 = vmatpush1.msra.mxu0 0.0
    %72 = vmatprep.subr.mxu0 0.0
    %73 = vmatpush1.msra.mxu0 0.0
    %74 = vmatprep.subr.mxu0 0.0
    %75 = vmatpush1.msra.mxu0 0.0
    %76 = vmatprep.subr.mxu0 0.0
    %77 = vmatpush1.msra.mxu0 0.0
    %78 = vmatprep.subr.mxu0 0.0
    %79 = vmatpush1.msra.mxu0 0.0
    %80 = vmatprep.subr.mxu0 0.0
    %81 = vmatpush1.msra.mxu0 0.0
    %82 = vmatprep.subr.mxu0 0.0
    %83 = vmatpush1.msra.mxu0 0.0
    %84 = vmatprep.subr.mxu0 0.0
    %85 = vmatpush1.msra.mxu0 0.0
    %86 = vmatprep.subr.mxu0 0.0
    %87 = vmatpush1.msra.mxu0 0.0
    %88 = vmatprep.mubr.f32.mxu0 0.0
    %89 = vmatmul.mubr.f32.gmra.mrb[0].mxu0 %v22
    %v90 = vpop.f32.mrb[0].mxu0
    %v91 = vadd.f32 %v19, %v90
    %v92 = vpop.f32.mrb[0].mxu0
    %93 = vdwg.mxu0
    %v94 = vmul.f32 %v91, 0.01
    %v95 = vmax.f32 %v91, %v94
    %v96 = vld [vmem:[%s1 + $0x10] sm:$0xff]
    %v97 = vld [vmem:[%s1 + $0x18] sm:$0xff]
    %v98 = vld [vmem:[%s1 + $0x20] sm:$0xff]
    %v99 = vld [vmem:[%s1 + $0x28] sm:$0xff]
    %v100 = vld [vmem:[%s1 + $0x91] sm:$0x1]
    %v101 = vlaneseq
    %v102 = vshrl.u32 %v101, 7
    %v103 = vsub.s32 0, %v102
    %v104 = vrot.slane %v100, %v103
    %vm105 = vcmask 261120
    %v107 = vsel %vm105, %v95, 0
    %109 = vmatprep.subr.mxu0 0.0
    %110 = vmatpush1.msra.mxu0 %v96
    %111 = vmatprep.subr.mxu0 0.0
    %112 = vmatpush1.msra.mxu0 %v97
    %113 = vmatprep.subr.mxu0 0.0
    %114 = vmatpush1.msra.mxu0 %v98
    %115 = vmatprep.subr.mxu0 0.0
    %116 = vmatpush1.msra.mxu0 %v99
    %117 = vmatprep.subr.mxu0 0.0
    %118 = vmatpush1.msra.mxu0 0.0
    %119 = vmatprep.subr.mxu0 0.0
    %120 = vmatpush1.msra.mxu0 0.0
    %121 = vmatprep.subr.mxu0 0.0
    %122 = vmatpush1.msra.mxu0 0.0
    %123 = vmatprep.subr.mxu0 0.0
    %124 = vmatpush1.msra.mxu0 0.0
    %125 = vmatprep.subr.mxu0 0.0
    %126 = vmatpush1.msra.mxu0 0.0
    %127 = vmatprep.subr.mxu0 0.0
    %128 = vmatpush1.msra.mxu0 0.0
    %129 = vmatprep.subr.mxu0 0.0
    %130 = vmatpush1.msra.mxu0 0.0
    %131 = vmatprep.subr.mxu0 0.0
    %132 = vmatpush1.msra.mxu0 0.0
    %133 = vmatprep.subr.mxu0 0.0
    %134 = vmatpush1.msra.mxu0 0.0
    %135 = vmatprep.subr.mxu0 0.0
    %136 = vmatpush1.msra.mxu0 0.0
    %137 = vmatprep.subr.mxu0 0.0
    %138 = vmatpush1.msra.mxu0 0.0
    %139 = vmatprep.subr.mxu0 0.0
    %140 = vmatpush1.msra.mxu0 0.0
    %141 = vmatprep.subr.mxu0 0.0
    %142 = vmatpush1.msra.mxu0 0.0
    %143 = vmatprep.subr.mxu0 0.0
    %144 = vmatpush1.msra.mxu0 0.0
    %145 = vmatprep.subr.mxu0 0.0
    %146 = vmatpush1.msra.mxu0 0.0
    %147 = vmatprep.subr.mxu0 0.0
    %148 = vmatpush1.msra.mxu0 0.0
    %149 = vmatprep.subr.mxu0 0.0
    %150 = vmatpush1.msra.mxu0 0.0
    %151 = vmatprep.subr.mxu0 0.0
    %152 = vmatpush1.msra.mxu0 0.0
    %153 = vmatprep.subr.mxu0 0.0
    %154 = vmatpush1.msra.mxu0 0.0
    %155 = vmatprep.subr.mxu0 0.0
    %156 = vmatpush1.msra.mxu0 0.0
    %157 = vmatprep.subr.mxu0 0.0
    %158 = vmatpush1.msra.mxu0 0.0
    %159 = vmatprep.subr.mxu0 0.0
    %160 = vmatpush1.msra.mxu0 0.0
    %161 = vmatprep.subr.mxu0 0.0
    %162 = vmatpush1.msra.mxu0 0.0
    %163 = vmatprep.subr.mxu0 0.0
    %164 = vmatpush1.msra.mxu0 0.0
    %165 = vmatprep.subr.mxu0 0.0
    %166 = vmatpush1.msra.mxu0 0.0
    %167 = vmatprep.subr.mxu0 0.0
    %168 = vmatpush1.msra.mxu0 0.0
    %169 = vmatprep.subr.mxu0 0.0
    %170 = vmatpush1.msra.mxu0 0.0
    %171 = vmatprep.subr.mxu0 0.0
    %172 = vmatpush1.msra.mxu0 0.0
    %173 = vmatprep.mubr.f32.mxu0 0.0
    %174 = vmatmul.mubr.f32.gmra.mrb[0].mxu0 %v107
    %v175 = vpop.f32.mrb[0].mxu0
    %v176 = vadd.f32 %v104, %v175
    %v177 = vpop.f32.mrb[0].mxu0
    %178 = vdwg.mxu0
    %v179 = vmul.f32 %v176, 0.01
    %v180 = vmax.f32 %v176, %v179
    %v181 = vadd.f32 %v180, %v95
    %v182 = vld [vmem:[%s1 + $0x30] sm:$0xff]
    %v183 = vld [vmem:[%s1 + $0x38] sm:$0xff]
    %v184 = vld [vmem:[%s1 + $0x40] sm:$0xff]
    %v185 = vld [vmem:[%s1 + $0x48] sm:$0xff]
    %v186 = vld [vmem:[%s1 + $0x92] sm:$0x1]
    %v187 = vlaneseq
    %v188 = vshrl.u32 %v187, 7
    %v189 = vsub.s32 0, %v188
    %v190 = vrot.slane %v186, %v189
    %v192 = vsel %vm105, %v181, 0
    %194 = vmatprep.subr.mxu0 0.0
    %195 = vmatpush1.msra.mxu0 %v182
    %196 = vmatprep.subr.mxu0 0.0
    %197 = vmatpush1.msra.mxu0 %v183
    %198 = vmatprep.subr.mxu0 0.0
    %199 = vmatpush1.msra.mxu0 %v184
    %200 = vmatprep.subr.mxu0 0.0
    %201 = vmatpush1.msra.mxu0 %v185
    %202 = vmatprep.subr.mxu0 0.0
    %203 = vmatpush1.msra.mxu0 0.0
    %204 = vmatprep.subr.mxu0 0.0
    %205 = vmatpush1.msra.mxu0 0.0
    %206 = vmatprep.subr.mxu0 0.0
    %207 = vmatpush1.msra.mxu0 0.0
    %208 = vmatprep.subr.mxu0 0.0
    %209 = vmatpush1.msra.mxu0 0.0
    %210 = vmatprep.subr.mxu0 0.0
    %211 = vmatpush1.msra.mxu0 0.0
    %212 = vmatprep.subr.mxu0 0.0
    %213 = vmatpush1.msra.mxu0 0.0
    %214 = vmatprep.subr.mxu0 0.0
    %215 = vmatpush1.msra.mxu0 0.0
    %216 = vmatprep.subr.mxu0 0.0
    %217 = vmatpush1.msra.mxu0 0.0
    %218 = vmatprep.subr.mxu0 0.0
    %219 = vmatpush1.msra.mxu0 0.0
    %220 = vmatprep.subr.mxu0 0.0
    %221 = vmatpush1.msra.mxu0 0.0
    %222 = vmatprep.subr.mxu0 0.0
    %223 = vmatpush1.msra.mxu0 0.0
    %224 = vmatprep.subr.mxu0 0.0
    %225 = vmatpush1.msra.mxu0 0.0
    %226 = vmatprep.subr.mxu0 0.0
    %227 = vmatpush1.msra.mxu0 0.0
    %228 = vmatprep.subr.mxu0 0.0
    %229 = vmatpush1.msra.mxu0 0.0
    %230 = vmatprep.subr.mxu0 0.0
    %231 = vmatpush1.msra.mxu0 0.0
    %232 = vmatprep.subr.mxu0 0.0
    %233 = vmatpush1.msra.mxu0 0.0
    %234 = vmatprep.subr.mxu0 0.0
    %235 = vmatpush1.msra.mxu0 0.0
    %236 = vmatprep.subr.mxu0 0.0
    %237 = vmatpush1.msra.mxu0 0.0
    %238 = vmatprep.subr.mxu0 0.0
    %239 = vmatpush1.msra.mxu0 0.0
    %240 = vmatprep.subr.mxu0 0.0
    %241 = vmatpush1.msra.mxu0 0.0
    %242 = vmatprep.subr.mxu0 0.0
    %243 = vmatpush1.msra.mxu0 0.0
    %244 = vmatprep.subr.mxu0 0.0
    %245 = vmatpush1.msra.mxu0 0.0
    %246 = vmatprep.subr.mxu0 0.0
    %247 = vmatpush1.msra.mxu0 0.0
    %248 = vmatprep.subr.mxu0 0.0
    %249 = vmatpush1.msra.mxu0 0.0
    %250 = vmatprep.subr.mxu0 0.0
    %251 = vmatpush1.msra.mxu0 0.0
    %252 = vmatprep.subr.mxu0 0.0
    %253 = vmatpush1.msra.mxu0 0.0
    %254 = vmatprep.subr.mxu0 0.0
    %255 = vmatpush1.msra.mxu0 0.0
    %256 = vmatprep.subr.mxu0 0.0
    %257 = vmatpush1.msra.mxu0 0.0
    %258 = vmatprep.mubr.f32.mxu0 0.0
    %259 = vmatmul.mubr.f32.gmra.mrb[0].mxu0 %v192
    %v260 = vpop.f32.mrb[0].mxu0
    %v261 = vadd.f32 %v190, %v260
    %v262 = vpop.f32.mrb[0].mxu0
    %263 = vdwg.mxu0
    %v264 = vmul.f32 %v261, 0.01
    %v265 = vmax.f32 %v261, %v264
    %v266 = vadd.f32 %v265, %v181
    %v267 = vld [vmem:[%s1 + $0x50] sm:$0xff]
    %v268 = vld [vmem:[%s1 + $0x58] sm:$0xff]
    %v269 = vld [vmem:[%s1 + $0x60] sm:$0xff]
    %v270 = vld [vmem:[%s1 + $0x68] sm:$0xff]
    %v271 = vld [vmem:[%s1 + $0x93] sm:$0x1]
    %v272 = vlaneseq
    %v273 = vshrl.u32 %v272, 7
    %v274 = vsub.s32 0, %v273
    %v275 = vrot.slane %v271, %v274
    %v277 = vsel %vm105, %v266, 0
    %279 = vmatprep.subr.mxu0 0.0
    %280 = vmatpush1.msra.mxu0 %v267
    %281 = vmatprep.subr.mxu0 0.0
    %282 = vmatpush1.msra.mxu0 %v268
    %283 = vmatprep.subr.mxu0 0.0
    %284 = vmatpush1.msra.mxu0 %v269
    %285 = vmatprep.subr.mxu0 0.0
    %286 = vmatpush1.msra.mxu0 %v270
    %287 = vmatprep.subr.mxu0 0.0
    %288 = vmatpush1.msra.mxu0 0.0
    %289 = vmatprep.subr.mxu0 0.0
    %290 = vmatpush1.msra.mxu0 0.0
    %291 = vmatprep.subr.mxu0 0.0
    %292 = vmatpush1.msra.mxu0 0.0
    %293 = vmatprep.subr.mxu0 0.0
    %294 = vmatpush1.msra.mxu0 0.0
    %295 = vmatprep.subr.mxu0 0.0
    %296 = vmatpush1.msra.mxu0 0.0
    %297 = vmatprep.subr.mxu0 0.0
    %298 = vmatpush1.msra.mxu0 0.0
    %299 = vmatprep.subr.mxu0 0.0
    %300 = vmatpush1.msra.mxu0 0.0
    %301 = vmatprep.subr.mxu0 0.0
    %302 = vmatpush1.msra.mxu0 0.0
    %303 = vmatprep.subr.mxu0 0.0
    %304 = vmatpush1.msra.mxu0 0.0
    %305 = vmatprep.subr.mxu0 0.0
    %306 = vmatpush1.msra.mxu0 0.0
    %307 = vmatprep.subr.mxu0 0.0
    %308 = vmatpush1.msra.mxu0 0.0
    %309 = vmatprep.subr.mxu0 0.0
    %310 = vmatpush1.msra.mxu0 0.0
    %311 = vmatprep.subr.mxu0 0.0
    %312 = vmatpush1.msra.mxu0 0.0
    %313 = vmatprep.subr.mxu0 0.0
    %314 = vmatpush1.msra.mxu0 0.0
    %315 = vmatprep.subr.mxu0 0.0
    %316 = vmatpush1.msra.mxu0 0.0
    %317 = vmatprep.subr.mxu0 0.0
    %318 = vmatpush1.msra.mxu0 0.0
    %319 = vmatprep.subr.mxu0 0.0
    %320 = vmatpush1.msra.mxu0 0.0
    %321 = vmatprep.subr.mxu0 0.0
    %322 = vmatpush1.msra.mxu0 0.0
    %323 = vmatprep.subr.mxu0 0.0
    %324 = vmatpush1.msra.mxu0 0.0
    %325 = vmatprep.subr.mxu0 0.0
    %326 = vmatpush1.msra.mxu0 0.0
    %327 = vmatprep.subr.mxu0 0.0
    %328 = vmatpush1.msra.mxu0 0.0
    %329 = vmatprep.subr.mxu0 0.0
    %330 = vmatpush1.msra.mxu0 0.0
    %331 = vmatprep.subr.mxu0 0.0
    %332 = vmatpush1.msra.mxu0 0.0
    %333 = vmatprep.subr.mxu0 0.0
    %334 = vmatpush1.msra.mxu0 0.0
    %335 = vmatprep.subr.mxu0 0.0
    %336 = vmatpush1.msra.mxu0 0.0
    %337 = vmatprep.subr.mxu0 0.0
    %338 = vmatpush1.msra.mxu0 0.0
    %339 = vmatprep.subr.mxu0 0.0
    %340 = vmatpush1.msra.mxu0 0.0
    %341 = vmatprep.subr.mxu0 0.0
    %342 = vmatpush1.msra.mxu0 0.0
    %343 = vmatprep.mubr.f32.mxu0 0.0
    %344 = vmatmul.mubr.f32.gmra.mrb[0].mxu0 %v277
    %v345 = vpop.f32.mrb[0].mxu0
    %v346 = vadd.f32 %v275, %v345
    %v347 = vpop.f32.mrb[0].mxu0
    %348 = vdwg.mxu0
    %v349 = vmul.f32 %v346, 0.01
    %v350 = vmax.f32 %v346, %v349
    %v351 = vadd.f32 %v350, %v266
    %v352 = vld [vmem:[%s1 + $0x70] sm:$0xff]
    %v353 = vld [vmem:[%s1 + $0x78] sm:$0xff]
    %v354 = vld [vmem:[%s1 + $0x80] sm:$0xff]
    %v355 = vld [vmem:[%s1 + $0x88] sm:$0xff]
    %v356 = vld [vmem:[%s1 + $0x94] sm:$0x1]
    %v357 = vlaneseq
    %v358 = vshrl.u32 %v357, 7
    %v359 = vsub.s32 0, %v358
    %v360 = vrot.slane %v356, %v359
    %v362 = vsel %vm105, %v351, 0
    %364 = vmatprep.subr.mxu0 0.0
    %365 = vmatpush1.msra.mxu0 %v352
    %366 = vmatprep.subr.mxu0 0.0
    %367 = vmatpush1.msra.mxu0 %v353
    %368 = vmatprep.subr.mxu0 0.0
    %369 = vmatpush1.msra.mxu0 %v354
    %370 = vmatprep.subr.mxu0 0.0
    %371 = vmatpush1.msra.mxu0 %v355
    %372 = vmatprep.subr.mxu0 0.0
    %373 = vmatpush1.msra.mxu0 0.0
    %374 = vmatprep.subr.mxu0 0.0
    %375 = vmatpush1.msra.mxu0 0.0
    %376 = vmatprep.subr.mxu0 0.0
    %377 = vmatpush1.msra.mxu0 0.0
    %378 = vmatprep.subr.mxu0 0.0
    %379 = vmatpush1.msra.mxu0 0.0
    %380 = vmatprep.subr.mxu0 0.0
    %381 = vmatpush1.msra.mxu0 0.0
    %382 = vmatprep.subr.mxu0 0.0
    %383 = vmatpush1.msra.mxu0 0.0
    %384 = vmatprep.subr.mxu0 0.0
    %385 = vmatpush1.msra.mxu0 0.0
    %386 = vmatprep.subr.mxu0 0.0
    %387 = vmatpush1.msra.mxu0 0.0
    %388 = vmatprep.subr.mxu0 0.0
    %389 = vmatpush1.msra.mxu0 0.0
    %390 = vmatprep.subr.mxu0 0.0
    %391 = vmatpush1.msra.mxu0 0.0
    %392 = vmatprep.subr.mxu0 0.0
    %393 = vmatpush1.msra.mxu0 0.0
    %394 = vmatprep.subr.mxu0 0.0
    %395 = vmatpush1.msra.mxu0 0.0
    %396 = vmatprep.subr.mxu0 0.0
    %397 = vmatpush1.msra.mxu0 0.0
    %398 = vmatprep.subr.mxu0 0.0
    %399 = vmatpush1.msra.mxu0 0.0
    %400 = vmatprep.subr.mxu0 0.0
    %401 = vmatpush1.msra.mxu0 0.0
    %402 = vmatprep.subr.mxu0 0.0
    %403 = vmatpush1.msra.mxu0 0.0
    %404 = vmatprep.subr.mxu0 0.0
    %405 = vmatpush1.msra.mxu0 0.0
    %406 = vmatprep.subr.mxu0 0.0
    %407 = vmatpush1.msra.mxu0 0.0
    %408 = vmatprep.subr.mxu0 0.0
    %409 = vmatpush1.msra.mxu0 0.0
    %410 = vmatprep.subr.mxu0 0.0
    %411 = vmatpush1.msra.mxu0 0.0
    %412 = vmatprep.subr.mxu0 0.0
    %413 = vmatpush1.msra.mxu0 0.0
    %414 = vmatprep.subr.mxu0 0.0
    %415 = vmatpush1.msra.mxu0 0.0
    %416 = vmatprep.subr.mxu0 0.0
    %417 = vmatpush1.msra.mxu0 0.0
    %418 = vmatprep.subr.mxu0 0.0
    %419 = vmatpush1.msra.mxu0 0.0
    %420 = vmatprep.subr.mxu0 0.0
    %421 = vmatpush1.msra.mxu0 0.0
    %422 = vmatprep.subr.mxu0 0.0
    %423 = vmatpush1.msra.mxu0 0.0
    %424 = vmatprep.subr.mxu0 0.0
    %425 = vmatpush1.msra.mxu0 0.0
    %426 = vmatprep.subr.mxu0 0.0
    %427 = vmatpush1.msra.mxu0 0.0
    %428 = vmatprep.mubr.f32.mxu0 0.0
    %429 = vmatmul.mubr.f32.gmra.mrb[0].mxu0 %v362
    %v430 = vpop.f32.mrb[0].mxu0
    %v431 = vadd.f32 %v360, %v430
    %v432 = vpop.f32.mrb[0].mxu0
    %433 = vdwg.mxu0
    %434 = vst.msk [vmem:[#allocation2] sm:$0xff] %vm105, %v431
    // Predicated region
    $region10: #{tpu_custom_call.1} parent=1 // pred_check
      _
    $region11: #{tpu_custom_call.1} parent=1 // pred_check_branch
      %436 = sbr.rel (0) target = $region13
    $region12: #{tpu_custom_call.1} parent=1 // pred_region
      %s438 = ssub.s32 128, 128
      %439 = vsyncadd [#allocation3], %s438
      %s441 = sshll.u32 [#allocation2], 4
      %s442 = int_to_ptr.vmem [resolvable:$true] %s441
      %444 = dma.vmem_to_hbm [thread:$0]  %s442, 128, %s2, [#allocation3]
    $region13: #{tpu_custom_call.1} parent=1 // pred_fallthru
      _
    // Predicated region
    $region14: #{tpu_custom_call.1} parent=1 // pred_check
      _
    $region15: #{tpu_custom_call.1} parent=1 // pred_check_branch
      %446 = sbr.rel (0) target = $region17
    $region16: #{tpu_custom_call.1} parent=1 // pred_region
      %447 = dma.done [#allocation3], 128
    $region17: #{tpu_custom_call.1} parent=1 // pred_fallthru
      _
    %448 = vsyncpa [#allocation3], 1

</llo_original>
